<compile_context>
chip_gen: v7x
topology: tpu7x:2x2x1
jax: 0.10.0
libtpu: 0.0.40
codegen_flags: <defaults>
</compile_context>

<pallas_src>
import math
from functools import partial

import jax
import jax.numpy as jnp
from jax.experimental import pallas as pl
from jax.experimental.pallas import tpu as pltpu


def _agent_attention_kernel(g_ref, depot_ref, f_ref,
                            wqg_ref, wqd_ref, bq_ref,
                            wk_ref, bk_ref, wv_ref, bv_ref,
                            out_ref, *,
                            n_agent, key_size, value_size, n_batch, n_nodes_m1):
    A, K, V = n_agent, key_size, value_size
    B, Nm1 = n_batch, n_nodes_m1

    g = g_ref[...]          # (B, H)
    depot = depot_ref[...]  # (B, H)
    f = f_ref[...]          # (B*Nm1, H)

    # Fused projections across all agents (one MXU pass each, A*K / A*V lanes).
    # q = Linear(cat(g, depot)) split as g @ Wq_top + depot @ Wq_bottom.
    q_all = (jnp.dot(g, wqg_ref[...], preferred_element_type=jnp.float32)
             + jnp.dot(depot, wqd_ref[...], preferred_element_type=jnp.float32)
             + bq_ref[...])                                            # (B, A*K)
    k_all = jnp.dot(f, wk_ref[...],
                    preferred_element_type=jnp.float32) + bk_ref[...]  # (B*Nm1, A*K)
    v_all = jnp.dot(f, wv_ref[...],
                    preferred_element_type=jnp.float32) + bv_ref[...]  # (B*Nm1, A*V)

    # Layout-preserving split of the fused batch*node axis (Nm1 is a sublane
    # multiple at these shapes, so this is free).
    k3 = k_all.reshape(B, Nm1, A * K)
    v3 = v_all.reshape(B, Nm1, A * V)

    inv_sqrt_k = 1.0 / math.sqrt(K)

    # Per-agent score / softmax / readout: tiny VPU+XLU work, statically unrolled.
    embs = []
    for a in range(A):
        q_a = q_all[:, a * K:(a + 1) * K]             # (B, K)
        k_a = k3[:, :, a * K:(a + 1) * K]             # (B, Nm1, K)
        v_a = v3[:, :, a * V:(a + 1) * V]             # (B, Nm1, V)

        # u = (k . q) / sqrt(K)  -> (B, Nm1)   (VPU multiply + lane reduce)
        u = jnp.sum(k_a * q_a[:, None, :], axis=-1) * inv_sqrt_k
        # softmax over the node axis (== torch dim=-2 of the (B, Nm1, 1) scores)
        u = u - jnp.max(u, axis=-1, keepdims=True)
        p = jnp.exp(u)
        w = p / jnp.sum(p, axis=-1, keepdims=True)    # (B, Nm1)

        # agent_embedding = w^T @ v  -> (B, V)
        embs.append(jnp.sum(w[:, :, None] * v_a, axis=1))

    # Single lane-dense store of the whole (B, A*V) slab.
    out_ref[...] = jnp.concatenate(embs, axis=-1)


def agent_and_node_embedding(nodes_h, g_h, params, *, n_agent, key_size):
    """Pallas implementation of AgentAndNode_embedding.forward (post-GIN part)."""
    B, N, H = nodes_h.shape
    Nm1 = N - 1
    A = n_agent
    K = key_size
    V = params['wv'].shape[-1]

    # Glue (cheap slices / bitcast reshapes only; no concat, no transpose).
    depot = nodes_h[:, 0, :]                     # (B, H)
    nodes_no_depot = nodes_h[:, 1:, :]           # (B, Nm1, H)  (also returned)
    f_flat = nodes_no_depot.reshape(B * Nm1, H)  # contiguous -> free reshape

    # Fuse per-agent weights along the output axis: (A, in, out) -> (in, A*out).
    wq_all = jnp.transpose(params['wq'], (1, 0, 2)).reshape(2 * H, A * K)
    wq_g, wq_d = wq_all[:H], wq_all[H:]          # top rows hit g_h, bottom rows hit depot
    bq = params['bq'].reshape(1, A * K)
    wk = jnp.transpose(params['wk'], (1, 0, 2)).reshape(H, A * K)
    bk = params['bk'].reshape(1, A * K)
    wv = jnp.transpose(params['wv'], (1, 0, 2)).reshape(H, A * V)
    bv = params['bv'].reshape(1, A * V)

    out = pl.pallas_call(
        partial(_agent_attention_kernel, n_agent=A, key_size=K, value_size=V,
                n_batch=B, n_nodes_m1=Nm1),
        out_shape=jax.ShapeDtypeStruct((B, A * V), jnp.float32),
        grid_spec=pltpu.PrefetchScalarGridSpec(
            num_scalar_prefetch=0,
            grid=(1,),
            in_specs=[
                pl.BlockSpec((B, H), lambda i: (0, 0)),          # g_h
                pl.BlockSpec((B, H), lambda i: (0, 0)),          # depot row
                pl.BlockSpec((B * Nm1, H), lambda i: (0, 0)),    # nodes (flat)
                pl.BlockSpec((H, A * K), lambda i: (0, 0)),      # wq (g half)
                pl.BlockSpec((H, A * K), lambda i: (0, 0)),      # wq (depot half)
                pl.BlockSpec((1, A * K), lambda i: (0, 0)),      # bq
                pl.BlockSpec((H, A * K), lambda i: (0, 0)),      # wk
                pl.BlockSpec((1, A * K), lambda i: (0, 0)),      # bk
                pl.BlockSpec((H, A * V), lambda i: (0, 0)),      # wv
                pl.BlockSpec((1, A * V), lambda i: (0, 0)),      # bv
            ],
            out_specs=pl.BlockSpec((B, A * V), lambda i: (0, 0)),
        ),
        compiler_params=pltpu.CompilerParams(
            dimension_semantics=("arbitrary",)),
    )(g_h, depot, f_flat, wq_g, wq_d, bq, wk, bk, wv, bv)

    agent_embeddings = out.reshape(B, A, V)      # contiguous -> free reshape
    return agent_embeddings, nodes_no_depot


def _reference(nodes_h, g_h, params, *, n_agent, key_size):
    """Pure-JAX reference mirroring the PyTorch module, for correctness check."""
    f_c = jnp.concatenate([g_h[:, None, :], nodes_h[:, 0:1, :]], axis=-1)  # (B,1,2H)
    f = nodes_h[:, 1:, :]                                                  # (B,Nm1,H)
    embs = []
    for a in range(n_agent):
        q = f_c @ params['wq'][a] + params['bq'][a]         # (B,1,K)
        k = f @ params['wk'][a] + params['bk'][a]           # (B,Nm1,K)
        v = f @ params['wv'][a] + params['bv'][a]           # (B,Nm1,V)
        u = (k @ jnp.swapaxes(q, -1, -2)) / math.sqrt(key_size)  # (B,Nm1,1)
        u_ = jnp.swapaxes(jax.nn.softmax(u, axis=-2), -1, -2)    # (B,1,Nm1)
        embs.append(u_ @ v)                                      # (B,1,V)
    return jnp.concatenate(embs, axis=1), f


if __name__ == "__main__":
    # Small shapes consistent with the module.
    n_batch = 2
    n_nodes = 9          # depot + 8 city nodes
    hid_chnl = 32        # H (GIN hidden width)
    key_size = 16
    value_size = 16
    n_agent = 3

    key = jax.random.PRNGKey(0)
    k_nodes, k_gh, kq, kbq, kk, kbk, kv, kbv = jax.random.split(key, 8)

    # Synthetic GIN outputs (see TODO above).
    nodes_h = jax.random.normal(k_nodes, (n_batch, n_nodes, hid_chnl), jnp.float32)
    g_h = jax.random.normal(k_gh, (n_batch, hid_chnl), jnp.float32)

    # Deterministic per-agent Linear params, stacked on a leading agent axis,
    # already transposed to (in, out) so y = x @ W + b.
    def lin_init(kw, fan_in, shape):
        bound = 1.0 / math.sqrt(fan_in)
        return jax.random.uniform(kw, shape, jnp.float32, -bound, bound)

    params = {
        'wq': lin_init(kq, 2 * hid_chnl, (n_agent, 2 * hid_chnl, key_size)),
        'bq': lin_init(kbq, 2 * hid_chnl, (n_agent, key_size)),
        'wk': lin_init(kk, hid_chnl, (n_agent, hid_chnl, key_size)),
        'bk': lin_init(kbk, hid_chnl, (n_agent, key_size)),
        'wv': lin_init(kv, hid_chnl, (n_agent, hid_chnl, value_size)),
        'bv': lin_init(kbv, hid_chnl, (n_agent, value_size)),
    }

    agent_emb, nodes_no_depot = agent_and_node_embedding(
        nodes_h, g_h, params, n_agent=n_agent, key_size=key_size)
    agent_emb = jax.block_until_ready(agent_emb)
    nodes_no_depot = jax.block_until_ready(nodes_no_depot)

    ref_emb, ref_nodes = _reference(
        nodes_h, g_h, params, n_agent=n_agent, key_size=key_size)

    assert agent_emb.shape == (n_batch, n_agent, value_size)
    assert nodes_no_depot.shape == (n_batch, n_nodes - 1, hid_chnl)
    assert jnp.allclose(agent_emb, ref_emb, atol=1e-4, rtol=1e-4)
    assert jnp.allclose(nodes_no_depot, ref_nodes)

    print("KERNEL_OK")
</pallas_src>

<mosaic_0001>
module attributes {stable_mosaic.version = 11 : i64} {
  func.func @_agent_attention_kernel(%arg0: i32, %arg1: memref<2x32xf32, #tpu.memory_space<vmem>>, %arg2: memref<2x32xf32, #tpu.memory_space<vmem>>, %arg3: memref<16x32xf32, #tpu.memory_space<vmem>>, %arg4: memref<32x48xf32, #tpu.memory_space<vmem>>, %arg5: memref<32x48xf32, #tpu.memory_space<vmem>>, %arg6: memref<1x48xf32, #tpu.memory_space<vmem>>, %arg7: memref<32x48xf32, #tpu.memory_space<vmem>>, %arg8: memref<1x48xf32, #tpu.memory_space<vmem>>, %arg9: memref<32x48xf32, #tpu.memory_space<vmem>>, %arg10: memref<1x48xf32, #tpu.memory_space<vmem>>, %arg11: memref<2x48xf32, #tpu.memory_space<vmem>>) attributes {dimension_semantics = [#tpu.dimension_semantics<arbitrary>], iteration_bounds = array<i64: 1>, scalar_prefetch = 0 : i64, scratch_operands = 0 : i64, tpu.core_type = #tpu.core_type<tc>, window_params = [{pipeline_mode = #tpu.pipeline_mode<synchronous>, transform_indices = @transform_0, window_bounds = array<i64: 2, 32>}, {pipeline_mode = #tpu.pipeline_mode<synchronous>, transform_indices = @transform_1, window_bounds = array<i64: 2, 32>}, {pipeline_mode = #tpu.pipeline_mode<synchronous>, transform_indices = @transform_2, window_bounds = array<i64: 16, 32>}, {pipeline_mode = #tpu.pipeline_mode<synchronous>, transform_indices = @transform_3, window_bounds = array<i64: 32, 48>}, {pipeline_mode = #tpu.pipeline_mode<synchronous>, transform_indices = @transform_4, window_bounds = array<i64: 32, 48>}, {pipeline_mode = #tpu.pipeline_mode<synchronous>, transform_indices = @transform_5, window_bounds = array<i64: 1, 48>}, {pipeline_mode = #tpu.pipeline_mode<synchronous>, transform_indices = @transform_6, window_bounds = array<i64: 32, 48>}, {pipeline_mode = #tpu.pipeline_mode<synchronous>, transform_indices = @transform_7, window_bounds = array<i64: 1, 48>}, {pipeline_mode = #tpu.pipeline_mode<synchronous>, transform_indices = @transform_8, window_bounds = array<i64: 32, 48>}, {pipeline_mode = #tpu.pipeline_mode<synchronous>, transform_indices = @transform_9, window_bounds = array<i64: 1, 48>}, {pipeline_mode = #tpu.pipeline_mode<synchronous>, transform_indices = @transform_10, window_bounds = array<i64: 2, 48>}]} {
    %c0 = arith.constant 0 : index
    %c0_0 = arith.constant 0 : index
    %0 = vector.load %arg1[%c0, %c0_0] : memref<2x32xf32, #tpu.memory_space<vmem>>, vector<2x32xf32>
    %c0_1 = arith.constant 0 : index
    %c0_2 = arith.constant 0 : index
    %1 = vector.load %arg2[%c0_1, %c0_2] : memref<2x32xf32, #tpu.memory_space<vmem>>, vector<2x32xf32>
    %c0_3 = arith.constant 0 : index
    %c0_4 = arith.constant 0 : index
    %2 = vector.load %arg3[%c0_3, %c0_4] : memref<16x32xf32, #tpu.memory_space<vmem>>, vector<16x32xf32>
    %c0_5 = arith.constant 0 : index
    %c0_6 = arith.constant 0 : index
    %3 = vector.load %arg4[%c0_5, %c0_6] : memref<32x48xf32, #tpu.memory_space<vmem>>, vector<32x48xf32>
    %cst = arith.constant dense<0.000000e+00> : vector<2x48xf32>
    %4 = tpu.matmul %0, %3, %cst {dimension_numbers = #tpu.dot_dimension_numbers<[1], [0], [0], [1], [0, 0, 1, 1], [], []>} : vector<2x32xf32>, vector<32x48xf32>, vector<2x48xf32> -> vector<2x48xf32>
    %c0_7 = arith.constant 0 : index
    %c0_8 = arith.constant 0 : index
    %5 = vector.load %arg5[%c0_7, %c0_8] : memref<32x48xf32, #tpu.memory_space<vmem>>, vector<32x48xf32>
    %cst_9 = arith.constant dense<0.000000e+00> : vector<2x48xf32>
    %6 = tpu.matmul %1, %5, %cst_9 {dimension_numbers = #tpu.dot_dimension_numbers<[1], [0], [0], [1], [0, 0, 1, 1], [], []>} : vector<2x32xf32>, vector<32x48xf32>, vector<2x48xf32> -> vector<2x48xf32>
    %7 = arith.addf %4, %6 : vector<2x48xf32>
    %c0_10 = arith.constant 0 : index
    %c0_11 = arith.constant 0 : index
    %8 = vector.load %arg6[%c0_10, %c0_11] : memref<1x48xf32, #tpu.memory_space<vmem>>, vector<1x48xf32>
    %9 = vector.broadcast %8 : vector<1x48xf32> to vector<2x48xf32>
    %10 = arith.addf %7, %9 : vector<2x48xf32>
    %c0_12 = arith.constant 0 : index
    %c0_13 = arith.constant 0 : index
    %11 = vector.load %arg7[%c0_12, %c0_13] : memref<32x48xf32, #tpu.memory_space<vmem>>, vector<32x48xf32>
    %cst_14 = arith.constant dense<0.000000e+00> : vector<16x48xf32>
    %12 = tpu.matmul %2, %11, %cst_14 {dimension_numbers = #tpu.dot_dimension_numbers<[1], [0], [0], [1], [0, 0, 1, 1], [], []>} : vector<16x32xf32>, vector<32x48xf32>, vector<16x48xf32> -> vector<16x48xf32>
    %c0_15 = arith.constant 0 : index
    %c0_16 = arith.constant 0 : index
    %13 = vector.load %arg8[%c0_15, %c0_16] : memref<1x48xf32, #tpu.memory_space<vmem>>, vector<1x48xf32>
    %14 = vector.broadcast %13 : vector<1x48xf32> to vector<16x48xf32>
    %15 = arith.addf %12, %14 : vector<16x48xf32>
    %c0_17 = arith.constant 0 : index
    %c0_18 = arith.constant 0 : index
    %16 = vector.load %arg9[%c0_17, %c0_18] : memref<32x48xf32, #tpu.memory_space<vmem>>, vector<32x48xf32>
    %cst_19 = arith.constant dense<0.000000e+00> : vector<16x48xf32>
    %17 = tpu.matmul %2, %16, %cst_19 {dimension_numbers = #tpu.dot_dimension_numbers<[1], [0], [0], [1], [0, 0, 1, 1], [], []>} : vector<16x32xf32>, vector<32x48xf32>, vector<16x48xf32> -> vector<16x48xf32>
    %c0_20 = arith.constant 0 : index
    %c0_21 = arith.constant 0 : index
    %18 = vector.load %arg10[%c0_20, %c0_21] : memref<1x48xf32, #tpu.memory_space<vmem>>, vector<1x48xf32>
    %19 = vector.broadcast %18 : vector<1x48xf32> to vector<16x48xf32>
    %20 = arith.addf %17, %19 : vector<16x48xf32>
    %21 = vector.shape_cast %15 : vector<16x48xf32> to vector<2x8x48xf32>
    %22 = vector.shape_cast %20 : vector<16x48xf32> to vector<2x8x48xf32>
    %23 = vector.extract_strided_slice %10 {offsets = [0, 0], sizes = [2, 16], strides = [1, 1]} : vector<2x48xf32> to vector<2x16xf32>
    %24 = vector.extract_strided_slice %21 {offsets = [0, 0, 0], sizes = [2, 8, 16], strides = [1, 1, 1]} : vector<2x8x48xf32> to vector<2x8x16xf32>
    %25 = vector.extract_strided_slice %22 {offsets = [0, 0, 0], sizes = [2, 8, 16], strides = [1, 1, 1]} : vector<2x8x48xf32> to vector<2x8x16xf32>
    %26 = vector.shape_cast %23 : vector<2x16xf32> to vector<2x1x16xf32>
    %27 = vector.broadcast %26 : vector<2x1x16xf32> to vector<2x8x16xf32>
    %28 = arith.mulf %24, %27 : vector<2x8x16xf32>
    %cst_22 = arith.constant dense<0.000000e+00> : vector<2x8xf32>
    %29 = vector.multi_reduction <add>, %28, %cst_22 [2] : vector<2x8x16xf32> to vector<2x8xf32>
    %cst_23 = arith.constant 2.500000e-01 : f32
    %30 = vector.broadcast %cst_23 : f32 to vector<2x8xf32>
    %31 = arith.mulf %29, %30 : vector<2x8xf32>
    %cst_24 = arith.constant dense<0xFF800000> : vector<2xf32>
    %32 = vector.multi_reduction <maximumf>, %31, %cst_24 [1] : vector<2x8xf32> to vector<2xf32>
    %33 = vector.shape_cast %32 : vector<2xf32> to vector<2x1xf32>
    %34 = vector.broadcast %33 : vector<2x1xf32> to vector<2x8xf32>
    %35 = arith.subf %31, %34 : vector<2x8xf32>
    %36 = math.exp %35 : vector<2x8xf32>
    %cst_25 = arith.constant dense<0.000000e+00> : vector<2xf32>
    %37 = vector.multi_reduction <add>, %36, %cst_25 [1] : vector<2x8xf32> to vector<2xf32>
    %38 = vector.shape_cast %37 : vector<2xf32> to vector<2x1xf32>
    %39 = vector.broadcast %38 : vector<2x1xf32> to vector<2x8xf32>
    %40 = arith.divf %36, %39 : vector<2x8xf32>
    %41 = vector.shape_cast %40 : vector<2x8xf32> to vector<2x8x1xf32>
    %42 = vector.broadcast %41 : vector<2x8x1xf32> to vector<2x8x16xf32>
    %43 = arith.mulf %42, %25 : vector<2x8x16xf32>
    %cst_26 = arith.constant dense<0.000000e+00> : vector<2x16xf32>
    %44 = vector.multi_reduction <add>, %43, %cst_26 [1] : vector<2x8x16xf32> to vector<2x16xf32>
    %45 = vector.extract_strided_slice %10 {offsets = [0, 16], sizes = [2, 16], strides = [1, 1]} : vector<2x48xf32> to vector<2x16xf32>
    %46 = vector.extract_strided_slice %21 {offsets = [0, 0, 16], sizes = [2, 8, 16], strides = [1, 1, 1]} : vector<2x8x48xf32> to vector<2x8x16xf32>
    %47 = vector.extract_strided_slice %22 {offsets = [0, 0, 16], sizes = [2, 8, 16], strides = [1, 1, 1]} : vector<2x8x48xf32> to vector<2x8x16xf32>
    %48 = vector.shape_cast %45 : vector<2x16xf32> to vector<2x1x16xf32>
    %49 = vector.broadcast %48 : vector<2x1x16xf32> to vector<2x8x16xf32>
    %50 = arith.mulf %46, %49 : vector<2x8x16xf32>
    %cst_27 = arith.constant dense<0.000000e+00> : vector<2x8xf32>
    %51 = vector.multi_reduction <add>, %50, %cst_27 [2] : vector<2x8x16xf32> to vector<2x8xf32>
    %cst_28 = arith.constant 2.500000e-01 : f32
    %52 = vector.broadcast %cst_28 : f32 to vector<2x8xf32>
    %53 = arith.mulf %51, %52 : vector<2x8xf32>
    %cst_29 = arith.constant dense<0xFF800000> : vector<2xf32>
    %54 = vector.multi_reduction <maximumf>, %53, %cst_29 [1] : vector<2x8xf32> to vector<2xf32>
    %55 = vector.shape_cast %54 : vector<2xf32> to vector<2x1xf32>
    %56 = vector.broadcast %55 : vector<2x1xf32> to vector<2x8xf32>
    %57 = arith.subf %53, %56 : vector<2x8xf32>
    %58 = math.exp %57 : vector<2x8xf32>
    %cst_30 = arith.constant dense<0.000000e+00> : vector<2xf32>
    %59 = vector.multi_reduction <add>, %58, %cst_30 [1] : vector<2x8xf32> to vector<2xf32>
    %60 = vector.shape_cast %59 : vector<2xf32> to vector<2x1xf32>
    %61 = vector.broadcast %60 : vector<2x1xf32> to vector<2x8xf32>
    %62 = arith.divf %58, %61 : vector<2x8xf32>
    %63 = vector.shape_cast %62 : vector<2x8xf32> to vector<2x8x1xf32>
    %64 = vector.broadcast %63 : vector<2x8x1xf32> to vector<2x8x16xf32>
    %65 = arith.mulf %64, %47 : vector<2x8x16xf32>
    %cst_31 = arith.constant dense<0.000000e+00> : vector<2x16xf32>
    %66 = vector.multi_reduction <add>, %65, %cst_31 [1] : vector<2x8x16xf32> to vector<2x16xf32>
    %67 = vector.extract_strided_slice %10 {offsets = [0, 32], sizes = [2, 16], strides = [1, 1]} : vector<2x48xf32> to vector<2x16xf32>
    %68 = vector.extract_strided_slice %21 {offsets = [0, 0, 32], sizes = [2, 8, 16], strides = [1, 1, 1]} : vector<2x8x48xf32> to vector<2x8x16xf32>
    %69 = vector.extract_strided_slice %22 {offsets = [0, 0, 32], sizes = [2, 8, 16], strides = [1, 1, 1]} : vector<2x8x48xf32> to vector<2x8x16xf32>
    %70 = vector.shape_cast %67 : vector<2x16xf32> to vector<2x1x16xf32>
    %71 = vector.broadcast %70 : vector<2x1x16xf32> to vector<2x8x16xf32>
    %72 = arith.mulf %68, %71 : vector<2x8x16xf32>
    %cst_32 = arith.constant dense<0.000000e+00> : vector<2x8xf32>
    %73 = vector.multi_reduction <add>, %72, %cst_32 [2] : vector<2x8x16xf32> to vector<2x8xf32>
    %cst_33 = arith.constant 2.500000e-01 : f32
    %74 = vector.broadcast %cst_33 : f32 to vector<2x8xf32>
    %75 = arith.mulf %73, %74 : vector<2x8xf32>
    %cst_34 = arith.constant dense<0xFF800000> : vector<2xf32>
    %76 = vector.multi_reduction <maximumf>, %75, %cst_34 [1] : vector<2x8xf32> to vector<2xf32>
    %77 = vector.shape_cast %76 : vector<2xf32> to vector<2x1xf32>
    %78 = vector.broadcast %77 : vector<2x1xf32> to vector<2x8xf32>
    %79 = arith.subf %75, %78 : vector<2x8xf32>
    %80 = math.exp %79 : vector<2x8xf32>
    %cst_35 = arith.constant dense<0.000000e+00> : vector<2xf32>
    %81 = vector.multi_reduction <add>, %80, %cst_35 [1] : vector<2x8xf32> to vector<2xf32>
    %82 = vector.shape_cast %81 : vector<2xf32> to vector<2x1xf32>
    %83 = vector.broadcast %82 : vector<2x1xf32> to vector<2x8xf32>
    %84 = arith.divf %80, %83 : vector<2x8xf32>
    %85 = vector.shape_cast %84 : vector<2x8xf32> to vector<2x8x1xf32>
    %86 = vector.broadcast %85 : vector<2x8x1xf32> to vector<2x8x16xf32>
    %87 = arith.mulf %86, %69 : vector<2x8x16xf32>
    %cst_36 = arith.constant dense<0.000000e+00> : vector<2x16xf32>
    %88 = vector.multi_reduction <add>, %87, %cst_36 [1] : vector<2x8x16xf32> to vector<2x16xf32>
    %89 = tpu.concatenate %44, %66, %88 in 1 : vector<2x16xf32>, vector<2x16xf32>, vector<2x16xf32> -> vector<2x48xf32>
    %c0_37 = arith.constant 0 : index
    %c0_38 = arith.constant 0 : index
    %90 = vector.load %arg11[%c0_37, %c0_38] : memref<2x48xf32, #tpu.memory_space<vmem>>, vector<2x48xf32>
    tpu.vector_store %arg11[%c0_37, %c0_38], %89 {strides = array<i32>} : memref<2x48xf32, #tpu.memory_space<vmem>>, vector<2x48xf32>,
    return
  }
  func.func @transform_0(%arg0: i32) -> (i32, i32) {
    %c0_i32 = arith.constant 0 : i32
    %c0_i32_0 = arith.constant 0 : i32
    %c0_i32_1 = arith.constant 0 : i32
    return %c0_i32, %c0_i32_0 : i32, i32
  }
  func.func @transform_1(%arg0: i32) -> (i32, i32) {
    %c0_i32 = arith.constant 0 : i32
    %c0_i32_0 = arith.constant 0 : i32
    %c0_i32_1 = arith.constant 0 : i32
    return %c0_i32, %c0_i32_0 : i32, i32
  }
  func.func @transform_2(%arg0: i32) -> (i32, i32) {
    %c0_i32 = arith.constant 0 : i32
    %c0_i32_0 = arith.constant 0 : i32
    %c0_i32_1 = arith.constant 0 : i32
    return %c0_i32, %c0_i32_0 : i32, i32
  }
  func.func @transform_3(%arg0: i32) -> (i32, i32) {
    %c0_i32 = arith.constant 0 : i32
    %c0_i32_0 = arith.constant 0 : i32
    %c0_i32_1 = arith.constant 0 : i32
    return %c0_i32, %c0_i32_0 : i32, i32
  }
  func.func @transform_4(%arg0: i32) -> (i32, i32) {
    %c0_i32 = arith.constant 0 : i32
    %c0_i32_0 = arith.constant 0 : i32
    %c0_i32_1 = arith.constant 0 : i32
    return %c0_i32, %c0_i32_0 : i32, i32
  }
  func.func @transform_5(%arg0: i32) -> (i32, i32) {
    %c0_i32 = arith.constant 0 : i32
    %c0_i32_0 = arith.constant 0 : i32
    %c0_i32_1 = arith.constant 0 : i32
    return %c0_i32, %c0_i32_0 : i32, i32
  }
  func.func @transform_6(%arg0: i32) -> (i32, i32) {
    %c0_i32 = arith.constant 0 : i32
    %c0_i32_0 = arith.constant 0 : i32
    %c0_i32_1 = arith.constant 0 : i32
    return %c0_i32, %c0_i32_0 : i32, i32
  }
  func.func @transform_7(%arg0: i32) -> (i32, i32) {
    %c0_i32 = arith.constant 0 : i32
    %c0_i32_0 = arith.constant 0 : i32
    %c0_i32_1 = arith.constant 0 : i32
    return %c0_i32, %c0_i32_0 : i32, i32
  }
  func.func @transform_8(%arg0: i32) -> (i32, i32) {
    %c0_i32 = arith.constant 0 : i32
    %c0_i32_0 = arith.constant 0 : i32
    %c0_i32_1 = arith.constant 0 : i32
    return %c0_i32, %c0_i32_0 : i32, i32
  }
  func.func @transform_9(%arg0: i32) -> (i32, i32) {
    %c0_i32 = arith.constant 0 : i32
    %c0_i32_0 = arith.constant 0 : i32
    %c0_i32_1 = arith.constant 0 : i32
    return %c0_i32, %c0_i32_0 : i32, i32
  }
  func.func @transform_10(%arg0: i32) -> (i32, i32) {
    %c0_i32 = arith.constant 0 : i32
    %c0_i32_0 = arith.constant 0 : i32
    %c0_i32_1 = arith.constant 0 : i32
    return %c0_i32, %c0_i32_0 : i32, i32
  }
}

</mosaic_0001>

<llo_original>
// kernel: tpu_custom_call.1
$region0: #{tpu_custom_call.1}
  #allocation0 [shape = 'u32[]', space=smem, size = 0x4, offset = 0x4, fixed_abs, tag = 'smem constant byte address 0x4 - core index']
  #allocation1 [shape = 'u32[144,128]{1,0:T(1,128)}', space=vmem, size = 0x12000, scoped, tag = 'internal scratch']
  %s0 = inlined_call_operand.hbm [shape: f32[2,32], index: 0, kind: input, shape index: {}]
  %s1 = inlined_call_operand.vmem [shape: f32[2,32], index: 1, kind: input, shape index: {}]
  %s2 = inlined_call_operand.hbm [shape: f32[16,32], index: 2, kind: input, shape index: {}]
  %s3 = inlined_call_operand.hbm [shape: f32[32,48], index: 3, kind: input, shape index: {}]
  %s4 = inlined_call_operand.hbm [shape: f32[32,48], index: 4, kind: input, shape index: {}]
  %s5 = inlined_call_operand.vmem [shape: f32[1,48], index: 5, kind: input, shape index: {}]
  %s6 = inlined_call_operand.hbm [shape: f32[32,48], index: 6, kind: input, shape index: {}]
  %s7 = inlined_call_operand.vmem [shape: f32[1,48], index: 7, kind: input, shape index: {}]
  %s8 = inlined_call_operand.hbm [shape: f32[32,48], index: 8, kind: input, shape index: {}]
  %s9 = inlined_call_operand.vmem [shape: f32[1,48], index: 9, kind: input, shape index: {}]
  %s10 = inlined_call_operand.hbm [shape: f32[2,48], index: 10, kind: output, shape index: {}]
  %s11 = sld [smem:[#allocation0]]
  $region74: #{tpu_custom_call.1} parent=0
    _
  %s13 = ssub.s32 1, %s11
  %s14 = scalar_select 0, %s13, %s11
  $region1: #{tpu_custom_call.1} parent=0
    #allocation2 [shape = 'u8[1024]{0}', space=vmem, size = 0x400, scoped, tag = 'input window, operand 0, single buffered']
    #allocation3 [shape = 's32[1]{0}', space=sflag, size = 0x4, scoped, tag = 'scoped memory for tpu_custom_call.1']
    #allocation4 [shape = 's32[1]{0}', space=sflag, size = 0x4, scoped, tag = 'scoped memory for tpu_custom_call.1']
    #allocation5 [shape = 'u8[8192]{0}', space=vmem, size = 0x2000, scoped, tag = 'input window, operand 2, single buffered']
    #allocation6 [shape = 's32[1]{0}', space=sflag, size = 0x4, scoped, tag = 'scoped memory for tpu_custom_call.1']
    #allocation7 [shape = 'u8[16384]{0}', space=vmem, size = 0x4000, scoped, tag = 'input window, operand 3, single buffered']
    #allocation8 [shape = 'u8[16384]{0}', space=vmem, size = 0x4000, scoped, tag = 'input window, operand 4, single buffered']
    #allocation9 [shape = 's32[1]{0}', space=sflag, size = 0x4, scoped, tag = 'scoped memory for tpu_custom_call.1']
    #allocation10 [shape = 'u8[16384]{0}', space=vmem, size = 0x4000, scoped, tag = 'input window, operand 6, single buffered']
    #allocation11 [shape = 'u8[16384]{0}', space=vmem, size = 0x4000, scoped, tag = 'input window, operand 8, single buffered']
    #allocation12 [shape = 's32[1]{0}', space=sflag, size = 0x4, scoped, tag = 'scoped memory for tpu_custom_call.1']
    #allocation13 [shape = 'u8[1024]{0}', space=vmem, size = 0x400, scoped, tag = 'output window, operand 0, single buffered']
    %15 = vsyncpa [#allocation3], 0
    %16 = vsyncpa [#allocation6], 0
    %17 = vsyncpa [#allocation9], 0
    %18 = vsyncpa [#allocation12], 0
    %19 = vsyncpa [#allocation4], 0
    // Predicated region
    $region2: #{tpu_custom_call.1} parent=1 // pred_check
      _
    $region3: #{tpu_custom_call.1} parent=1 // pred_check_branch
      %21 = sbr.rel (0) target = $region5
    $region4: #{tpu_custom_call.1} parent=1 // pred_region
      %s23 = ssub.s32 32, 32
      %24 = vsyncadd [#allocation3], %s23
      %s26 = sshll.u32 [#allocation2], 4
      %s27 = int_to_ptr.vmem [resolvable:$true] %s26
      %29 = dma.hbm_to_vmem [thread:$0]  %s0, 32, %s27, [#allocation3]
    $region5: #{tpu_custom_call.1} parent=1 // pred_fallthru
      _
    // Predicated region
    $region6: #{tpu_custom_call.1} parent=1 // pred_check
      _
    $region7: #{tpu_custom_call.1} parent=1 // pred_check_branch
      %31 = sbr.rel (0) target = $region9
    $region8: #{tpu_custom_call.1} parent=1 // pred_region
      _
    $region9: #{tpu_custom_call.1} parent=1 // pred_fallthru
      _
    // Predicated region
    $region10: #{tpu_custom_call.1} parent=1 // pred_check
      _
    $region11: #{tpu_custom_call.1} parent=1 // pred_check_branch
      %33 = sbr.rel (0) target = $region13
    $region12: #{tpu_custom_call.1} parent=1 // pred_region
      %s35 = ssub.s32 256, 256
      %36 = vsyncadd [#allocation6], %s35
      %s37 = sshll.u32 [#allocation5], 4
      %s38 = int_to_ptr.vmem [resolvable:$true] %s37
      %43 = dma.hbm_to_vmem [thread:$0]  %s2, 256, %s38, [#allocation6], 128, 128, 8
    $region13: #{tpu_custom_call.1} parent=1 // pred_fallthru
      _
    // Predicated region
    $region14: #{tpu_custom_call.1} parent=1 // pred_check
      _
    $region15: #{tpu_custom_call.1} parent=1 // pred_check_branch
      %45 = sbr.rel (0) target = $region17
    $region16: #{tpu_custom_call.1} parent=1 // pred_region
      %s47 = ssub.s32 512, 512
      %48 = vsyncadd [#allocation6], %s47
      %s49 = sshll.u32 [#allocation7], 4
      %s50 = int_to_ptr.vmem [resolvable:$true] %s49
      %55 = dma.hbm_to_vmem [thread:$0]  %s3, 512, %s50, [#allocation6], 128, 128, 8
    $region17: #{tpu_custom_call.1} parent=1 // pred_fallthru
      _
    // Predicated region
    $region18: #{tpu_custom_call.1} parent=1 // pred_check
      _
    $region19: #{tpu_custom_call.1} parent=1 // pred_check_branch
      %57 = sbr.rel (0) target = $region21
    $region20: #{tpu_custom_call.1} parent=1 // pred_region
      %s59 = ssub.s32 512, 512
      %60 = vsyncadd [#allocation9], %s59
      %s61 = sshll.u32 [#allocation8], 4
      %s62 = int_to_ptr.vmem [resolvable:$true] %s61
      %67 = dma.hbm_to_vmem [thread:$0]  %s4, 512, %s62, [#allocation9], 128, 128, 8
    $region21: #{tpu_custom_call.1} parent=1 // pred_fallthru
      _
    // Predicated region
    $region22: #{tpu_custom_call.1} parent=1 // pred_check
      _
    $region23: #{tpu_custom_call.1} parent=1 // pred_check_branch
      %69 = sbr.rel (0) target = $region25
    $region24: #{tpu_custom_call.1} parent=1 // pred_region
      _
    $region25: #{tpu_custom_call.1} parent=1 // pred_fallthru
      _
    // Predicated region
    $region26: #{tpu_custom_call.1} parent=1 // pred_check
      _
    $region27: #{tpu_custom_call.1} parent=1 // pred_check_branch
      %71 = sbr.rel (0) target = $region29
    $region28: #{tpu_custom_call.1} parent=1 // pred_region
      %s73 = ssub.s32 512, 512
      %74 = vsyncadd [#allocation9], %s73
      %s75 = sshll.u32 [#allocation10], 4
      %s76 = int_to_ptr.vmem [resolvable:$true] %s75
      %81 = dma.hbm_to_vmem [thread:$0]  %s6, 512, %s76, [#allocation9], 128, 128, 8
    $region29: #{tpu_custom_call.1} parent=1 // pred_fallthru
      _
    // Predicated region
    $region30: #{tpu_custom_call.1} parent=1 // pred_check
      _
    $region31: #{tpu_custom_call.1} parent=1 // pred_check_branch
      %83 = sbr.rel (0) target = $region33
    $region32: #{tpu_custom_call.1} parent=1 // pred_region
      _
    $region33: #{tpu_custom_call.1} parent=1 // pred_fallthru
      _
    // Predicated region
    $region34: #{tpu_custom_call.1} parent=1 // pred_check
      _
    $region35: #{tpu_custom_call.1} parent=1 // pred_check_branch
      %85 = sbr.rel (0) target = $region37
    $region36: #{tpu_custom_call.1} parent=1 // pred_region
      %s87 = ssub.s32 512, 512
      %88 = vsyncadd [#allocation12], %s87
      %s89 = sshll.u32 [#allocation11], 4
      %s90 = int_to_ptr.vmem [resolvable:$true] %s89
      %95 = dma.hbm_to_vmem [thread:$0]  %s8, 512, %s90, [#allocation12], 128, 128, 8
    $region37: #{tpu_custom_call.1} parent=1 // pred_fallthru
      _
    // Predicated region
    $region38: #{tpu_custom_call.1} parent=1 // pred_check
      _
    $region39: #{tpu_custom_call.1} parent=1 // pred_check_branch
      %97 = sbr.rel (0) target = $region41
    $region40: #{tpu_custom_call.1} parent=1 // pred_region
      _
    $region41: #{tpu_custom_call.1} parent=1 // pred_fallthru
      _
    // Predicated region
    $region42: #{tpu_custom_call.1} parent=1 // pred_check
      _
    $region43: #{tpu_custom_call.1} parent=1 // pred_check_branch
      %99 = sbr.rel (0) target = $region45
    $region44: #{tpu_custom_call.1} parent=1 // pred_region
      %100 = dma.done [#allocation3], 32
    $region45: #{tpu_custom_call.1} parent=1 // pred_fallthru
      _
    // Predicated region
    $region46: #{tpu_custom_call.1} parent=1 // pred_check
      _
    $region47: #{tpu_custom_call.1} parent=1 // pred_check_branch
      %102 = sbr.rel (0) target = $region49
    $region48: #{tpu_custom_call.1} parent=1 // pred_region
      %103 = dma.done [#allocation6], 256
    $region49: #{tpu_custom_call.1} parent=1 // pred_fallthru
      _
    // Predicated region
    $region50: #{tpu_custom_call.1} parent=1 // pred_check
      _
    $region51: #{tpu_custom_call.1} parent=1 // pred_check_branch
      %105 = sbr.rel (0) target = $region53
    $region52: #{tpu_custom_call.1} parent=1 // pred_region
      %106 = dma.done [#allocation6], 512
    $region53: #{tpu_custom_call.1} parent=1 // pred_fallthru
      _
    // Predicated region
    $region54: #{tpu_custom_call.1} parent=1 // pred_check
      _
    $region55: #{tpu_custom_call.1} parent=1 // pred_check_branch
      %108 = sbr.rel (0) target = $region57
    $region56: #{tpu_custom_call.1} parent=1 // pred_region
      %109 = dma.done [#allocation9], 512
    $region57: #{tpu_custom_call.1} parent=1 // pred_fallthru
      _
    // Predicated region
    $region58: #{tpu_custom_call.1} parent=1 // pred_check
      _
    $region59: #{tpu_custom_call.1} parent=1 // pred_check_branch
      %111 = sbr.rel (0) target = $region61
    $region60: #{tpu_custom_call.1} parent=1 // pred_region
      %112 = dma.done [#allocation9], 512
    $region61: #{tpu_custom_call.1} parent=1 // pred_fallthru
      _
    // Predicated region
    $region62: #{tpu_custom_call.1} parent=1 // pred_check
      _
    $region63: #{tpu_custom_call.1} parent=1 // pred_check_branch
      %114 = sbr.rel (0) target = $region65
    $region64: #{tpu_custom_call.1} parent=1 // pred_region
      %115 = dma.done [#allocation12], 512
    $region65: #{tpu_custom_call.1} parent=1 // pred_fallthru
      _
    %v116 = vld [vmem:[#allocation2] sm:$0x3]
    %v117 = vld [vmem:[%s1] sm:$0x3]
    %v118 = vld [vmem:[#allocation5] sm:$0xff]
    %v119 = vld [vmem:[#allocation5 + $0x8] sm:$0xff]
    %v120 = vld [vmem:[#allocation7] sm:$0xff]
    %v121 = vld [vmem:[#allocation7 + $0x8] sm:$0xff]
    %v122 = vld [vmem:[#allocation7 + $0x10] sm:$0xff]
    %v123 = vld [vmem:[#allocation7 + $0x18] sm:$0xff]
    %v124 = vld [vmem:[#allocation8] sm:$0xff]
    %v125 = vld [vmem:[#allocation8 + $0x8] sm:$0xff]
    %v126 = vld [vmem:[#allocation8 + $0x10] sm:$0xff]
    %v127 = vld [vmem:[#allocation8 + $0x18] sm:$0xff]
    %vm128 = vcmask 261120
    %v130 = vsel %vm128, %v117, 0
    %132 = vmatprep.subr.mxu0 0.0
    %133 = vmatpush1.msra.mxu0 %v124
    %134 = vmatprep.subr.mxu0 0.0
    %135 = vmatpush1.msra.mxu0 %v125
    %136 = vmatprep.subr.mxu0 0.0
    %137 = vmatpush1.msra.mxu0 %v126
    %138 = vmatprep.subr.mxu0 0.0
    %139 = vmatpush1.msra.mxu0 %v127
    %140 = vmatprep.subr.mxu0 0.0
    %141 = vmatpush1.msra.mxu0 0.0
    %142 = vmatprep.subr.mxu0 0.0
    %143 = vmatpush1.msra.mxu0 0.0
    %144 = vmatprep.subr.mxu0 0.0
    %145 = vmatpush1.msra.mxu0 0.0
    %146 = vmatprep.subr.mxu0 0.0
    %147 = vmatpush1.msra.mxu0 0.0
    %148 = vmatprep.subr.mxu0 0.0
    %149 = vmatpush1.msra.mxu0 0.0
    %150 = vmatprep.subr.mxu0 0.0
    %151 = vmatpush1.msra.mxu0 0.0
    %152 = vmatprep.subr.mxu0 0.0
    %153 = vmatpush1.msra.mxu0 0.0
    %154 = vmatprep.subr.mxu0 0.0
    %155 = vmatpush1.msra.mxu0 0.0
    %156 = vmatprep.subr.mxu0 0.0
    %157 = vmatpush1.msra.mxu0 0.0
    %158 = vmatprep.subr.mxu0 0.0
    %159 = vmatpush1.msra.mxu0 0.0
    %160 = vmatprep.subr.mxu0 0.0
    %161 = vmatpush1.msra.mxu0 0.0
    %162 = vmatprep.subr.mxu0 0.0
    %163 = vmatpush1.msra.mxu0 0.0
    %164 = vmatprep.subr.mxu0 0.0
    %165 = vmatpush1.msra.mxu0 0.0
    %166 = vmatprep.subr.mxu0 0.0
    %167 = vmatpush1.msra.mxu0 0.0
    %168 = vmatprep.subr.mxu0 0.0
    %169 = vmatpush1.msra.mxu0 0.0
    %170 = vmatprep.subr.mxu0 0.0
    %171 = vmatpush1.msra.mxu0 0.0
    %172 = vmatprep.subr.mxu0 0.0
    %173 = vmatpush1.msra.mxu0 0.0
    %174 = vmatprep.subr.mxu0 0.0
    %175 = vmatpush1.msra.mxu0 0.0
    %176 = vmatprep.subr.mxu0 0.0
    %177 = vmatpush1.msra.mxu0 0.0
    %178 = vmatprep.subr.mxu0 0.0
    %179 = vmatpush1.msra.mxu0 0.0
    %180 = vmatprep.subr.mxu0 0.0
    %181 = vmatpush1.msra.mxu0 0.0
    %182 = vmatprep.subr.mxu0 0.0
    %183 = vmatpush1.msra.mxu0 0.0
    %184 = vmatprep.subr.mxu0 0.0
    %185 = vmatpush1.msra.mxu0 0.0
    %186 = vmatprep.subr.mxu0 0.0
    %187 = vmatpush1.msra.mxu0 0.0
    %188 = vmatprep.subr.mxu0 0.0
    %189 = vmatpush1.msra.mxu0 0.0
    %190 = vmatprep.subr.mxu0 0.0
    %191 = vmatpush1.msra.mxu0 0.0
    %192 = vmatprep.subr.mxu0 0.0
    %193 = vmatpush1.msra.mxu0 0.0
    %194 = vmatprep.subr.mxu0 0.0
    %195 = vmatpush1.msra.mxu0 0.0
    %196 = vmatprep.mubr.f32.mxu0 0.0
    %197 = vmatmul.mubr.f32.gmra.mrb[0].mxu0 %v130
    %v198 = vpop.f32.mrb[0].mxu0
    %v199 = vadd.f32 0.0, %v198
    %v200 = vpop.f32.mrb[0].mxu0
    %201 = vdwg.mxu0
    %v203 = vsel %vm128, %v116, 0
    %205 = vmatprep.subr.mxu0 0.0
    %206 = vmatpush1.msra.mxu0 %v120
    %207 = vmatprep.subr.mxu0 0.0
    %208 = vmatpush1.msra.mxu0 %v121
    %209 = vmatprep.subr.mxu0 0.0
    %210 = vmatpush1.msra.mxu0 %v122
    %211 = vmatprep.subr.mxu0 0.0
    %212 = vmatpush1.msra.mxu0 %v123
    %213 = vmatprep.subr.mxu0 0.0
    %214 = vmatpush1.msra.mxu0 0.0
    %215 = vmatprep.subr.mxu0 0.0
    %216 = vmatpush1.msra.mxu0 0.0
    %217 = vmatprep.subr.mxu0 0.0
    %218 = vmatpush1.msra.mxu0 0.0
    %219 = vmatprep.subr.mxu0 0.0
    %220 = vmatpush1.msra.mxu0 0.0
    %221 = vmatprep.subr.mxu0 0.0
    %222 = vmatpush1.msra.mxu0 0.0
    %223 = vmatprep.subr.mxu0 0.0
    %224 = vmatpush1.msra.mxu0 0.0
    %225 = vmatprep.subr.mxu0 0.0
    %226 = vmatpush1.msra.mxu0 0.0
    %227 = vmatprep.subr.mxu0 0.0
    %228 = vmatpush1.msra.mxu0 0.0
    %229 = vmatprep.subr.mxu0 0.0
    %230 = vmatpush1.msra.mxu0 0.0
    %231 = vmatprep.subr.mxu0 0.0
    %232 = vmatpush1.msra.mxu0 0.0
    %233 = vmatprep.subr.mxu0 0.0
    %234 = vmatpush1.msra.mxu0 0.0
    %235 = vmatprep.subr.mxu0 0.0
    %236 = vmatpush1.msra.mxu0 0.0
    %237 = vmatprep.subr.mxu0 0.0
    %238 = vmatpush1.msra.mxu0 0.0
    %239 = vmatprep.subr.mxu0 0.0
    %240 = vmatpush1.msra.mxu0 0.0
    %241 = vmatprep.subr.mxu0 0.0
    %242 = vmatpush1.msra.mxu0 0.0
    %243 = vmatprep.subr.mxu0 0.0
    %244 = vmatpush1.msra.mxu0 0.0
    %245 = vmatprep.subr.mxu0 0.0
    %246 = vmatpush1.msra.mxu0 0.0
    %247 = vmatprep.subr.mxu0 0.0
    %248 = vmatpush1.msra.mxu0 0.0
    %249 = vmatprep.subr.mxu0 0.0
    %250 = vmatpush1.msra.mxu0 0.0
    %251 = vmatprep.subr.mxu0 0.0
    %252 = vmatpush1.msra.mxu0 0.0
    %253 = vmatprep.subr.mxu0 0.0
    %254 = vmatpush1.msra.mxu0 0.0
    %255 = vmatprep.subr.mxu0 0.0
    %256 = vmatpush1.msra.mxu0 0.0
    %257 = vmatprep.subr.mxu0 0.0
    %258 = vmatpush1.msra.mxu0 0.0
    %259 = vmatprep.subr.mxu0 0.0
    %260 = vmatpush1.msra.mxu0 0.0
    %261 = vmatprep.subr.mxu0 0.0
    %262 = vmatpush1.msra.mxu0 0.0
    %263 = vmatprep.subr.mxu0 0.0
    %264 = vmatpush1.msra.mxu0 0.0
    %265 = vmatprep.subr.mxu0 0.0
    %266 = vmatpush1.msra.mxu0 0.0
    %267 = vmatprep.subr.mxu0 0.0
    %268 = vmatpush1.msra.mxu0 0.0
    %269 = vmatprep.mubr.f32.mxu0 0.0
    %270 = vmatmul.mubr.f32.gmra.mrb[0].mxu0 %v203
    %v271 = vpop.f32.mrb[0].mxu0
    %v272 = vadd.f32 %v199, %v271
    %v273 = vpop.f32.mrb[0].mxu0
    %274 = vdwg.mxu0
    %v275 = vld [vmem:[%s5] sm:$0x1]
    %v277 = vlaneseq
    %v278 = vshrl.u32 %v277, 7
    %v279 = vsub.s32 0, %v278
    %v280 = vrot.slane %v275, %v279
    %v282 = vadd.f32 %v272, %v280
    %v283 = vld [vmem:[#allocation10] sm:$0xff]
    %v284 = vld [vmem:[#allocation10 + $0x8] sm:$0xff]
    %v285 = vld [vmem:[#allocation10 + $0x10] sm:$0xff]
    %v286 = vld [vmem:[#allocation10 + $0x18] sm:$0xff]
    %v287 = vld [vmem:[%s7] sm:$0x1]
    %v289 = vlaneseq
    %v290 = vshrl.u32 %v289, 7
    %v291 = vsub.s32 0, %v290
    %v292 = vrot.slane %v287, %v291
    %v295 = vsel %vm128, %v118, 0
    %v298 = vsel %vm128, %v119, 0
    %300 = vmatprep.subr.mxu0 0.0
    %301 = vmatpush1.msra.mxu0 %v283
    %302 = vmatprep.subr.mxu0 0.0
    %303 = vmatpush1.msra.mxu0 %v284
    %304 = vmatprep.subr.mxu0 0.0
    %305 = vmatpush1.msra.mxu0 %v285
    %306 = vmatprep.subr.mxu0 0.0
    %307 = vmatpush1.msra.mxu0 %v286
    %308 = vmatprep.subr.mxu0 0.0
    %309 = vmatpush1.msra.mxu0 0.0
    %310 = vmatprep.subr.mxu0 0.0
    %311 = vmatpush1.msra.mxu0 0.0
    %312 = vmatprep.subr.mxu0 0.0
    %313 = vmatpush1.msra.mxu0 0.0
    %314 = vmatprep.subr.mxu0 0.0
    %315 = vmatpush1.msra.mxu0 0.0
    %316 = vmatprep.subr.mxu0 0.0
    %317 = vmatpush1.msra.mxu0 0.0
    %318 = vmatprep.subr.mxu0 0.0
    %319 = vmatpush1.msra.mxu0 0.0
    %320 = vmatprep.subr.mxu0 0.0
    %321 = vmatpush1.msra.mxu0 0.0
    %322 = vmatprep.subr.mxu0 0.0
    %323 = vmatpush1.msra.mxu0 0.0
    %324 = vmatprep.subr.mxu0 0.0
    %325 = vmatpush1.msra.mxu0 0.0
    %326 = vmatprep.subr.mxu0 0.0
    %327 = vmatpush1.msra.mxu0 0.0
    %328 = vmatprep.subr.mxu0 0.0
    %329 = vmatpush1.msra.mxu0 0.0
    %330 = vmatprep.subr.mxu0 0.0
    %331 = vmatpush1.msra.mxu0 0.0
    %332 = vmatprep.subr.mxu0 0.0
    %333 = vmatpush1.msra.mxu0 0.0
    %334 = vmatprep.subr.mxu0 0.0
    %335 = vmatpush1.msra.mxu0 0.0
    %336 = vmatprep.subr.mxu0 0.0
    %337 = vmatpush1.msra.mxu0 0.0
    %338 = vmatprep.subr.mxu0 0.0
    %339 = vmatpush1.msra.mxu0 0.0
    %340 = vmatprep.subr.mxu0 0.0
    %341 = vmatpush1.msra.mxu0 0.0
    %342 = vmatprep.subr.mxu0 0.0
    %343 = vmatpush1.msra.mxu0 0.0
    %344 = vmatprep.subr.mxu0 0.0
    %345 = vmatpush1.msra.mxu0 0.0
    %346 = vmatprep.subr.mxu0 0.0
    %347 = vmatpush1.msra.mxu0 0.0
    %348 = vmatprep.subr.mxu0 0.0
    %349 = vmatpush1.msra.mxu0 0.0
    %350 = vmatprep.subr.mxu0 0.0
    %351 = vmatpush1.msra.mxu0 0.0
    %352 = vmatprep.subr.mxu0 0.0
    %353 = vmatpush1.msra.mxu0 0.0
    %354 = vmatprep.subr.mxu0 0.0
    %355 = vmatpush1.msra.mxu0 0.0
    %356 = vmatprep.subr.mxu0 0.0
    %357 = vmatpush1.msra.mxu0 0.0
    %358 = vmatprep.subr.mxu0 0.0
    %359 = vmatpush1.msra.mxu0 0.0
    %360 = vmatprep.subr.mxu0 0.0
    %361 = vmatpush1.msra.mxu0 0.0
    %362 = vmatprep.subr.mxu0 0.0
    %363 = vmatpush1.msra.mxu0 0.0
    %364 = vmatprep.mubr.f32.mxu0 0.0
    %365 = vmatmul.mubr.f32.gmra.mrb[0].mxu0 %v295
    %v366 = vpop.f32.mrb[0].mxu0
    %v367 = vadd.f32 %v292, %v366
    %v368 = vpop.f32.mrb[0].mxu0
    %369 = vmatprep.mubr.f32.mxu0 0.0
    %370 = vmatmul.mubr.f32.gmra.mrb[0].mxu0 %v298
    %v371 = vpop.f32.mrb[0].mxu0
    %v372 = vadd.f32 %v292, %v371
    %v373 = vpop.f32.mrb[0].mxu0
    %374 = vdwg.mxu0
    %v375 = vld [vmem:[#allocation11] sm:$0xff]
    %v376 = vld [vmem:[#allocation11 + $0x8] sm:$0xff]
    %v377 = vld [vmem:[#allocation11 + $0x10] sm:$0xff]
    %v378 = vld [vmem:[#allocation11 + $0x18] sm:$0xff]
    %v379 = vld [vmem:[%s9] sm:$0x1]
    %v381 = vlaneseq
    %v382 = vshrl.u32 %v381, 7
    %v383 = vsub.s32 0, %v382
    %v384 = vrot.slane %v379, %v383
    %386 = vmatprep.subr.mxu0 0.0
    %387 = vmatpush1.msra.mxu0 %v375
    %388 = vmatprep.subr.mxu0 0.0
    %389 = vmatpush1.msra.mxu0 %v376
    %390 = vmatprep.subr.mxu0 0.0
    %391 = vmatpush1.msra.mxu0 %v377
    %392 = vmatprep.subr.mxu0 0.0
    %393 = vmatpush1.msra.mxu0 %v378
    %394 = vmatprep.subr.mxu0 0.0
    %395 = vmatpush1.msra.mxu0 0.0
    %396 = vmatprep.subr.mxu0 0.0
    %397 = vmatpush1.msra.mxu0 0.0
    %398 = vmatprep.subr.mxu0 0.0
    %399 = vmatpush1.msra.mxu0 0.0
    %400 = vmatprep.subr.mxu0 0.0
    %401 = vmatpush1.msra.mxu0 0.0
    %402 = vmatprep.subr.mxu0 0.0
    %403 = vmatpush1.msra.mxu0 0.0
    %404 = vmatprep.subr.mxu0 0.0
    %405 = vmatpush1.msra.mxu0 0.0
    %406 = vmatprep.subr.mxu0 0.0
    %407 = vmatpush1.msra.mxu0 0.0
    %408 = vmatprep.subr.mxu0 0.0
    %409 = vmatpush1.msra.mxu0 0.0
    %410 = vmatprep.subr.mxu0 0.0
    %411 = vmatpush1.msra.mxu0 0.0
    %412 = vmatprep.subr.mxu0 0.0
    %413 = vmatpush1.msra.mxu0 0.0
    %414 = vmatprep.subr.mxu0 0.0
    %415 = vmatpush1.msra.mxu0 0.0
    %416 = vmatprep.subr.mxu0 0.0
    %417 = vmatpush1.msra.mxu0 0.0
    %418 = vmatprep.subr.mxu0 0.0
    %419 = vmatpush1.msra.mxu0 0.0
    %420 = vmatprep.subr.mxu0 0.0
    %421 = vmatpush1.msra.mxu0 0.0
    %422 = vmatprep.subr.mxu0 0.0
    %423 = vmatpush1.msra.mxu0 0.0
    %424 = vmatprep.subr.mxu0 0.0
    %425 = vmatpush1.msra.mxu0 0.0
    %426 = vmatprep.subr.mxu0 0.0
    %427 = vmatpush1.msra.mxu0 0.0
    %428 = vmatprep.subr.mxu0 0.0
    %429 = vmatpush1.msra.mxu0 0.0
    %430 = vmatprep.subr.mxu0 0.0
    %431 = vmatpush1.msra.mxu0 0.0
    %432 = vmatprep.subr.mxu0 0.0
    %433 = vmatpush1.msra.mxu0 0.0
    %434 = vmatprep.subr.mxu0 0.0
    %435 = vmatpush1.msra.mxu0 0.0
    %436 = vmatprep.subr.mxu0 0.0
    %437 = vmatpush1.msra.mxu0 0.0
    %438 = vmatprep.subr.mxu0 0.0
    %439 = vmatpush1.msra.mxu0 0.0
    %440 = vmatprep.subr.mxu0 0.0
    %441 = vmatpush1.msra.mxu0 0.0
    %442 = vmatprep.subr.mxu0 0.0
    %443 = vmatpush1.msra.mxu0 0.0
    %444 = vmatprep.subr.mxu0 0.0
    %445 = vmatpush1.msra.mxu0 0.0
    %446 = vmatprep.subr.mxu0 0.0
    %447 = vmatpush1.msra.mxu0 0.0
    %448 = vmatprep.subr.mxu0 0.0
    %449 = vmatpush1.msra.mxu0 0.0
    %450 = vmatprep.mubr.f32.mxu0 0.0
    %451 = vmatmul.mubr.f32.gmra.mrb[0].mxu0 %v295
    %v452 = vpop.f32.mrb[0].mxu0
    %v453 = vadd.f32 %v384, %v452
    %v454 = vpop.f32.mrb[0].mxu0
    %455 = vmatprep.mubr.f32.mxu0 0.0
    %456 = vmatmul.mubr.f32.gmra.mrb[0].mxu0 %v298
    %v457 = vpop.f32.mrb[0].mxu0
    %v458 = vadd.f32 %v384, %v457
    %v459 = vpop.f32.mrb[0].mxu0
    %460 = vdwg.mxu0
    %v463 = vunpack.c.l.s4 1966171168
    %v464 = vunpack.c.0.s8 %v463
    %v465 = vlaneseq
    %v466 = vshrl.u32 %v465, 7
    %v467 = vsub.s32 %v464, %v466
    %v468 = vrot.slane %v282, %v467
    %v469 = vcombine.high %v468, %v468
    %v471 = vunpack.c.l.s4 1966171168
    %v472 = vunpack.c.0.s8 %v471
    %v473 = vlaneseq
    %v474 = vshrl.u32 %v473, 7
    %v475 = vsub.s32 %v472, %v474
    %v476 = vrot.slane %v468, %v475
    %v478 = vunpack.c.l.s4 1966171168
    %v479 = vunpack.c.0.s8 %v478
    %v480 = vlaneseq
    %v481 = vshrl.u32 %v480, 7
    %v482 = vsub.s32 %v479, %v481
    %v483 = vrot.slane %v469, %v482
    %v484 = vlaneseq
    %v485 = vshrl.u32 %v484, 7
    %v486 = vsub.s32 0, %v485
    %v487 = vrot.slane %v476, %v486
    %v488 = vlaneseq
    %v489 = vshrl.u32 %v488, 7
    %v490 = vsub.s32 0, %v489
    %v491 = vrot.slane %v483, %v490
    %v494 = vmul.f32 %v367, %v487
    %v495 = vmul.f32 %v372, %v491
    %vm496 = vcmask 130048
    %v497 = vsel %vm496, %v494, 0.0
    %498 = vadd.xlane.f32.xlu0 %v497
    %v499 = vpop.xlane.xlu0 %498
    %v500 = vsel %vm496, %v495, 0.0
    %501 = vadd.xlane.f32.xlu0 %v500
    %v502 = vpop.xlane.xlu0 %501
    %v503 = vmul.f32 %v499, 0.25
    %v504 = vmul.f32 %v502, 0.25
    %v507 = vlaneseq
    %v508 = vand.u32 %v507, 127
    %v509 = vlaneseq
    %v510 = vshrl.u32 %v509, 7
    %v511 = vsub.s32 %v508, %v510
    %v512 = vrot.slane %v503, %v511
    %v513 = vlaneseq
    %v514 = vshrl.u32 %v513, 7
    %v515 = vsub.s32 %v508, %v514
    %v516 = vrot.slane %v504, %v515
    %vm517 = vcmask 1041409
    %v518 = vsel %vm517, %v516, %v512
    %vm520 = vcmask 58368
    %v521 = vsel %vm520, %v518, -inf
    %522 = vmax.xlane.f32.xlu0 %v521
    %v523 = vpop.xlane.xlu0 %522
    %v525 = vlaneseq
    %v526 = vshrl.u32 %v525, 7
    %v527 = vsub.s32 0, %v526
    %v528 = vrot.slane %v523, %v527
    %v529 = vlaneseq
    %v530 = vshrl.u32 %v529, 7
    %v531 = vsub.s32 1, %v530
    %v532 = vrot.slane %v523, %v531
    %v535 = vsub.f32 %v503, %v528
    %v536 = vsub.f32 %v504, %v532
    %v537 = vmul.f32 %v535, 1.442695
    %v538 = vpow.pop %v537
    %v539 = vmul.f32 %v536, 1.442695
    %v540 = vpow.pop %v539
    %543 = vset.pattern.permute.xlu0 0
    %544 = vperm.xlu0 %543, %v538
    %v545 = vpop.permute.xlu0 %544
    %546 = vset.pattern.permute.xlu0 0
    %547 = vperm.xlu0 %546, %v540
    %v548 = vpop.permute.xlu0 %547
    %v549 = vlaneseq
    %v550 = vshrl.u32 %v549, 7
    %v551 = vsub.s32 %v508, %v550
    %v552 = vrot.slane %v545, %v551
    %v553 = vlaneseq
    %v554 = vshrl.u32 %v553, 7
    %v555 = vsub.s32 %v508, %v554
    %v556 = vrot.slane %v548, %v555
    %v557 = vsel %vm517, %v556, %v552
    %v559 = vsel %vm520, %v557, 0.0
    %560 = vadd.xlane.f32.xlu0 %v559
    %v561 = vpop.xlane.xlu0 %560
    %v563 = vlaneseq
    %v564 = vshrl.u32 %v563, 7
    %v565 = vsub.s32 0, %v564
    %v566 = vrot.slane %v561, %v565
    %v567 = vlaneseq
    %v568 = vshrl.u32 %v567, 7
    %v569 = vsub.s32 1, %v568
    %v570 = vrot.slane %v561, %v569
    %v573 = vrcp.pop %v566
    %v574 = vmul.f32 %v538, %v573
    %v575 = vrcp.pop %v570
    %v576 = vmul.f32 %v540, %v575
    %578 = vset.pattern.permute.xlu0 0
    %579 = vperm.xlu0 %578, %v574
    %v580 = vpop.permute.xlu0 %579
    %583 = vset.pattern.permute.xlu0 0
    %584 = vperm.xlu0 %583, %v576
    %v585 = vpop.permute.xlu0 %584
    %v587 = vmul.f32 %v580, %v453
    %v588 = vmul.f32 %v585, %v458
    %v589 = vsel %vm496, %v587, 0.0
    %v590 = vrot.slane %v589, 4
    %v591 = vadd.f32 %v589, %v590
    %v592 = vrot.slane %v591, 2
    %v593 = vadd.f32 %v591, %v592
    %v594 = vrot.slane %v593, 1
    %v595 = vadd.f32 %v593, %v594
    %v596 = vsel %vm496, %v588, 0.0
    %v597 = vrot.slane %v596, 4
    %v598 = vadd.f32 %v596, %v597
    %v599 = vrot.slane %v598, 2
    %v600 = vadd.f32 %v598, %v599
    %v601 = vrot.slane %v600, 1
    %v602 = vadd.f32 %v600, %v601
    %605 = vrot.lane.b32.xlu0 %v494, 112
    %v606 = vpop.permute.xlu0 %605
    %607 = vrot.lane.b32.xlu0 %v495, 112
    %v608 = vpop.permute.xlu0 %607
    %v611 = vsel %vm496, %v606, 0.0
    %612 = vadd.xlane.f32.xlu0 %v611
    %v613 = vpop.xlane.xlu0 %612
    %v614 = vsel %vm496, %v608, 0.0
    %615 = vadd.xlane.f32.xlu0 %v614
    %v616 = vpop.xlane.xlu0 %615
    %v617 = vmul.f32 %v613, 0.25
    %v618 = vmul.f32 %v616, 0.25
    %v621 = vlaneseq
    %v622 = vshrl.u32 %v621, 7
    %v623 = vsub.s32 %v508, %v622
    %v624 = vrot.slane %v617, %v623
    %v625 = vlaneseq
    %v626 = vshrl.u32 %v625, 7
    %v627 = vsub.s32 %v508, %v626
    %v628 = vrot.slane %v618, %v627
    %v629 = vsel %vm517, %v628, %v624
    %v631 = vsel %vm520, %v629, -inf
    %632 = vmax.xlane.f32.xlu0 %v631
    %v633 = vpop.xlane.xlu0 %632
    %v635 = vlaneseq
    %v636 = vshrl.u32 %v635, 7
    %v637 = vsub.s32 0, %v636
    %v638 = vrot.slane %v633, %v637
    %v639 = vlaneseq
    %v640 = vshrl.u32 %v639, 7
    %v641 = vsub.s32 1, %v640
    %v642 = vrot.slane %v633, %v641
    %v645 = vsub.f32 %v617, %v638
    %v646 = vsub.f32 %v618, %v642
    %v647 = vmul.f32 %v645, 1.442695
    %v648 = vpow.pop %v647
    %v649 = vmul.f32 %v646, 1.442695
    %v650 = vpow.pop %v649
    %653 = vset.pattern.permute.xlu0 0
    %654 = vperm.xlu0 %653, %v648
    %v655 = vpop.permute.xlu0 %654
    %656 = vset.pattern.permute.xlu0 0
    %657 = vperm.xlu0 %656, %v650
    %v658 = vpop.permute.xlu0 %657
    %v659 = vlaneseq
    %v660 = vshrl.u32 %v659, 7
    %v661 = vsub.s32 %v508, %v660
    %v662 = vrot.slane %v655, %v661
    %v663 = vlaneseq
    %v664 = vshrl.u32 %v663, 7
    %v665 = vsub.s32 %v508, %v664
    %v666 = vrot.slane %v658, %v665
    %v667 = vsel %vm517, %v666, %v662
    %v669 = vsel %vm520, %v667, 0.0
    %670 = vadd.xlane.f32.xlu0 %v669
    %v671 = vpop.xlane.xlu0 %670
    %v673 = vlaneseq
    %v674 = vshrl.u32 %v673, 7
    %v675 = vsub.s32 0, %v674
    %v676 = vrot.slane %v671, %v675
    %v677 = vlaneseq
    %v678 = vshrl.u32 %v677, 7
    %v679 = vsub.s32 1, %v678
    %v680 = vrot.slane %v671, %v679
    %v683 = vrcp.pop %v676
    %v684 = vmul.f32 %v648, %v683
    %v685 = vrcp.pop %v680
    %v686 = vmul.f32 %v650, %v685
    %688 = vset.pattern.permute.xlu0 0
    %689 = vperm.xlu0 %688, %v684
    %v690 = vpop.permute.xlu0 %689
    %693 = vset.pattern.permute.xlu0 0
    %694 = vperm.xlu0 %693, %v686
    %v695 = vpop.permute.xlu0 %694
    %v697 = vmul.f32 %v690, %v453
    %v698 = vmul.f32 %v695, %v458
    %vm699 = vcmask 261248
    %v700 = vsel %vm699, %v697, 0.0
    %v701 = vrot.slane %v700, 4
    %v702 = vadd.f32 %v700, %v701
    %v703 = vrot.slane %v702, 2
    %v704 = vadd.f32 %v702, %v703
    %v705 = vrot.slane %v704, 1
    %v706 = vadd.f32 %v704, %v705
    %v707 = vsel %vm699, %v698, 0.0
    %v708 = vrot.slane %v707, 4
    %v709 = vadd.f32 %v707, %v708
    %v710 = vrot.slane %v709, 2
    %v711 = vadd.f32 %v709, %v710
    %v712 = vrot.slane %v711, 1
    %v713 = vadd.f32 %v711, %v712
    %714 = vrot.lane.b32.xlu0 %v494, 96
    %v715 = vpop.permute.xlu0 %714
    %716 = vrot.lane.b32.xlu0 %v495, 96
    %v717 = vpop.permute.xlu0 %716
    %v720 = vsel %vm496, %v715, 0.0
    %721 = vadd.xlane.f32.xlu0 %v720
    %v722 = vpop.xlane.xlu0 %721
    %v723 = vsel %vm496, %v717, 0.0
    %724 = vadd.xlane.f32.xlu0 %v723
    %v725 = vpop.xlane.xlu0 %724
    %v726 = vmul.f32 %v722, 0.25
    %v727 = vmul.f32 %v725, 0.25
    %v730 = vlaneseq
    %v731 = vshrl.u32 %v730, 7
    %v732 = vsub.s32 %v508, %v731
    %v733 = vrot.slane %v726, %v732
    %v734 = vlaneseq
    %v735 = vshrl.u32 %v734, 7
    %v736 = vsub.s32 %v508, %v735
    %v737 = vrot.slane %v727, %v736
    %v738 = vsel %vm517, %v737, %v733
    %v740 = vsel %vm520, %v738, -inf
    %741 = vmax.xlane.f32.xlu0 %v740
    %v742 = vpop.xlane.xlu0 %741
    %v744 = vlaneseq
    %v745 = vshrl.u32 %v744, 7
    %v746 = vsub.s32 0, %v745
    %v747 = vrot.slane %v742, %v746
    %v748 = vlaneseq
    %v749 = vshrl.u32 %v748, 7
    %v750 = vsub.s32 1, %v749
    %v751 = vrot.slane %v742, %v750
    %v754 = vsub.f32 %v726, %v747
    %v755 = vsub.f32 %v727, %v751
    %v756 = vmul.f32 %v754, 1.442695
    %v757 = vpow.pop %v756
    %v758 = vmul.f32 %v755, 1.442695
    %v759 = vpow.pop %v758
    %762 = vset.pattern.permute.xlu0 0
    %763 = vperm.xlu0 %762, %v757
    %v764 = vpop.permute.xlu0 %763
    %765 = vset.pattern.permute.xlu0 0
    %766 = vperm.xlu0 %765, %v759
    %v767 = vpop.permute.xlu0 %766
    %v768 = vlaneseq
    %v769 = vshrl.u32 %v768, 7
    %v770 = vsub.s32 %v508, %v769
    %v771 = vrot.slane %v764, %v770
    %v772 = vlaneseq
    %v773 = vshrl.u32 %v772, 7
    %v774 = vsub.s32 %v508, %v773
    %v775 = vrot.slane %v767, %v774
    %v776 = vsel %vm517, %v775, %v771
    %v778 = vsel %vm520, %v776, 0.0
    %779 = vadd.xlane.f32.xlu0 %v778
    %v780 = vpop.xlane.xlu0 %779
    %v782 = vlaneseq
    %v783 = vshrl.u32 %v782, 7
    %v784 = vsub.s32 0, %v783
    %v785 = vrot.slane %v780, %v784
    %v786 = vlaneseq
    %v787 = vshrl.u32 %v786, 7
    %v788 = vsub.s32 1, %v787
    %v789 = vrot.slane %v780, %v788
    %v792 = vrcp.pop %v785
    %v793 = vmul.f32 %v757, %v792
    %v794 = vrcp.pop %v789
    %v795 = vmul.f32 %v759, %v794
    %797 = vset.pattern.permute.xlu0 0
    %798 = vperm.xlu0 %797, %v793
    %v799 = vpop.permute.xlu0 %798
    %802 = vset.pattern.permute.xlu0 0
    %803 = vperm.xlu0 %802, %v795
    %v804 = vpop.permute.xlu0 %803
    %v806 = vmul.f32 %v799, %v453
    %v807 = vmul.f32 %v804, %v458
    %vm808 = vcmask 392448
    %v809 = vsel %vm808, %v806, 0.0
    %v810 = vrot.slane %v809, 4
    %v811 = vadd.f32 %v809, %v810
    %v812 = vrot.slane %v811, 2
    %v813 = vadd.f32 %v811, %v812
    %v814 = vrot.slane %v813, 1
    %v815 = vadd.f32 %v813, %v814
    %v816 = vsel %vm808, %v807, 0.0
    %v817 = vrot.slane %v816, 4
    %v818 = vadd.f32 %v816, %v817
    %v819 = vrot.slane %v818, 2
    %v820 = vadd.f32 %v818, %v819
    %v821 = vrot.slane %v820, 1
    %v822 = vadd.f32 %v820, %v821
    %v825 = vsel %vm517, %v602, %v595
    %v829 = vsel %vm517, %v713, %v706
    %v833 = vsel %vm517, %v822, %v815
    %v835 = vsel %vm496, %v825, %v829
    %v836 = vsel %vm128, %v835, %v833
    %vm837 = vcmask 386048
    %838 = vst.msk [vmem:[#allocation13] sm:$0x3] %vm837, %v836
    // Predicated region
    $region66: #{tpu_custom_call.1} parent=1 // pred_check
      _
    $region67: #{tpu_custom_call.1} parent=1 // pred_check_branch
      %840 = sbr.rel (0) target = $region69
    $region68: #{tpu_custom_call.1} parent=1 // pred_region
      %s842 = ssub.s32 32, 32
      %843 = vsyncadd [#allocation4], %s842
      %s845 = sshll.u32 [#allocation13], 4
      %s846 = int_to_ptr.vmem [resolvable:$true] %s845
      %848 = dma.vmem_to_hbm [thread:$0]  %s846, 32, %s10, [#allocation4]
    $region69: #{tpu_custom_call.1} parent=1 // pred_fallthru
      _
    // Predicated region
    $region70: #{tpu_custom_call.1} parent=1 // pred_check
      _
    $region71: #{tpu_custom_call.1} parent=1 // pred_check_branch
      %850 = sbr.rel (0) target = $region73
    $region72: #{tpu_custom_call.1} parent=1 // pred_region
      %851 = dma.done [#allocation4], 32
    $region73: #{tpu_custom_call.1} parent=1 // pred_fallthru
      _
    %852 = vsyncpa [#allocation3], 1
    %853 = vsyncpa [#allocation6], 1
    %854 = vsyncpa [#allocation9], 1
    %855 = vsyncpa [#allocation12], 1
    %856 = vsyncpa [#allocation4], 1

</llo_original>
